<compile_context>
chip_gen: v6e
topology: v6e:2x2x1
jax: 0.10.0
libtpu: 0.0.40
codegen_flags: <defaults>
</compile_context>

<pallas_src>
import jax
import jax.numpy as jnp
from jax.experimental import pallas as pl
from jax.experimental.pallas import tpu as pltpu


def attention_kernel(x_ref, m_ref, wu_ref, bu_ref, wa_ref, o_ref):
    # x_ref:  (TN, L, H)   m_ref: (TN, L)
    # wu_ref: (H, H)       bu_ref: (1, H)     wa_ref: (1, H)
    # o_ref:  (TN, H)
    tn, L, H = x_ref.shape

    x = x_ref[...]                                     # (TN, L, H) f32
    x2 = x.reshape(tn * L, H)                          # free: L == sublane count

    # u = tanh(x @ Wu + bu)      -- single MXU matmul + VPU add + EUP tanh
    u = jnp.tanh(
        jnp.dot(x2, wu_ref[...], preferred_element_type=jnp.float32)
        + bu_ref[...]
    )                                                  # (TN*L, H)
    u3 = u.reshape(tn, L, H)

    # logits via VPU multiply + lane (XLU) reduce; avoids a width-1 MXU matmul
    logits = jnp.sum(u3 * wa_ref[...], axis=-1)        # (TN, L)

    # masked exp + normalize (matches torch: sum + 1e-9 in denominator;
    # no max-subtraction, to stay exactly faithful to the reference)
    a = jnp.exp(logits) * m_ref[...]                   # (TN, L)
    s = jnp.sum(a, axis=-1, keepdims=True) + 1e-9      # (TN, 1)
    alpha = a / s                                      # (TN, L)

    # weighted sum over the sentence-length axis, kept off the MXU
    out = jnp.sum(alpha[:, :, None] * x, axis=1)       # (TN, H)
    o_ref[...] = out.astype(o_ref.dtype)


def attention_forward(inputs, mask, w_u, b_u, w_alpha, *, tn=256):
    """inputs: (N, L, H) f32, mask: (N, L) f32 -> (N, H) f32."""
    N, L, H = inputs.shape

    # Tile size: multiple of 8 (sublane constraint on the (TN, L)/(TN, H)
    # blocks), no larger than N rounded up to 8.
    tn = max(8, (tn // 8) * 8)
    tn = min(tn, ((N + 7) // 8) * 8)
    n_pad = pl.cdiv(N, tn) * tn

    x = inputs.astype(jnp.float32)
    m = mask.astype(jnp.float32)
    if n_pad != N:
        # Padded rows have mask==0 -> alpha==0 -> zero output rows (sliced off).
        x = jnp.concatenate(
            [x, jnp.zeros((n_pad - N, L, H), jnp.float32)], axis=0)
        m = jnp.concatenate(
            [m, jnp.zeros((n_pad - N, L), jnp.float32)], axis=0)

    b_u2 = b_u.reshape(1, H).astype(jnp.float32)
    wa_row = w_alpha.reshape(1, H).astype(jnp.float32)   # row vector, lane-dense
    wu = w_u.astype(jnp.float32)

    grid = (n_pad // tn,)

    cost = pl.CostEstimate(
        flops=2 * n_pad * L * H * H + 4 * n_pad * L * H,
        transcendentals=n_pad * L * (H + 1),
        bytes_accessed=4 * (n_pad * L * H + n_pad * L + n_pad * H
                            + H * H + 2 * H),
    )

    out = pl.pallas_call(
        attention_kernel,
        out_shape=jax.ShapeDtypeStruct((n_pad, H), jnp.float32),
        grid_spec=pltpu.PrefetchScalarGridSpec(
            num_scalar_prefetch=0,
            grid=grid,
            in_specs=[
                pl.BlockSpec((tn, L, H), lambda i: (i, 0, 0)),   # inputs tile
                pl.BlockSpec((tn, L), lambda i: (i, 0)),         # mask tile
                pl.BlockSpec((H, H), lambda i: (0, 0)),          # W_u (resident)
                pl.BlockSpec((1, H), lambda i: (0, 0)),          # b_u
                pl.BlockSpec((1, H), lambda i: (0, 0)),          # w_alpha row
            ],
            out_specs=pl.BlockSpec((tn, H), lambda i: (i, 0)),
        ),
        compiler_params=pltpu.CompilerParams(
            dimension_semantics=("parallel",),
            vmem_limit_bytes=32 * 1024 * 1024,
        ),
        cost_estimate=cost,
    )(x, m, wu, b_u2, wa_row)

    return out[:N]


def attention_reference(inputs, mask, w_u, b_u, w_alpha):
    """Plain-JAX reference mirroring the PyTorch forward."""
    N, L, H = inputs.shape
    tmp = inputs.reshape(-1, H)
    u = jnp.tanh(tmp @ w_u + b_u)
    alpha = (u @ w_alpha).reshape(N, 1, L)
    alpha = jnp.exp(alpha) * mask[:, None, :]
    denom = jnp.sum(alpha, axis=2, keepdims=True) + 1e-9
    alpha = alpha / denom
    return jnp.matmul(alpha, inputs).reshape(-1, H)


if __name__ == "__main__":
    # Small shapes: batch=2, max_doc_len=8 -> N=16; max_sen_len=8; hidden=32.
    # tn=8 -> 2 grid steps so both v7x TensorCores get work even at toy size.
    N, L, H = 16, 8, 32

    key = jax.random.PRNGKey(0)
    k_x, k_m, k_wu, k_bu, k_wa = jax.random.split(key, 5)

    inputs = jax.random.normal(k_x, (N, L, H), dtype=jnp.float32)
    mask = (jax.random.uniform(k_m, (N, L)) > 0.3).astype(jnp.float32)

    # Parameter init (shapes match nn.Linear(dim, dim) and
    # nn.Linear(dim, 1, bias=False)); stored transposed for x @ W form.
    bound = 1.0 / jnp.sqrt(jnp.float32(H))
    w_u = jax.random.uniform(k_wu, (H, H), jnp.float32, -bound, bound)
    b_u = jax.random.uniform(k_bu, (H,), jnp.float32, -bound, bound)
    w_alpha = jax.random.uniform(k_wa, (H, 1), jnp.float32, -bound, bound)

    out = attention_forward(inputs, mask, w_u, b_u, w_alpha, tn=8)
    out = jax.block_until_ready(out)

    ref = attention_reference(inputs, mask, w_u, b_u, w_alpha)
    assert out.shape == (N, H)
    assert jnp.allclose(out, ref, atol=1e-5, rtol=1e-5), "mismatch vs reference"

    print("KERNEL_OK")
</pallas_src>

<mosaic_0001>
module attributes {stable_mosaic.version = 11 : i64} {
  func.func @attention_kernel(%arg0: i32, %arg1: memref<8x8x32xf32, #tpu.memory_space<vmem>>, %arg2: memref<8x8xf32, #tpu.memory_space<vmem>>, %arg3: memref<32x32xf32, #tpu.memory_space<vmem>>, %arg4: memref<1x32xf32, #tpu.memory_space<vmem>>, %arg5: memref<1x32xf32, #tpu.memory_space<vmem>>, %arg6: memref<8x32xf32, #tpu.memory_space<vmem>>) attributes {dimension_semantics = [#tpu.dimension_semantics<parallel>], iteration_bounds = array<i64: 2>, scalar_prefetch = 0 : i64, scratch_operands = 0 : i64, tpu.core_type = #tpu.core_type<tc>, window_params = [{transform_indices = @transform_0, window_bounds = array<i64: 8, 8, 32>}, {transform_indices = @transform_1, window_bounds = array<i64: 8, 8>}, {pipeline_mode = #tpu.pipeline_mode<synchronous>, transform_indices = @transform_2, window_bounds = array<i64: 32, 32>}, {pipeline_mode = #tpu.pipeline_mode<synchronous>, transform_indices = @transform_3, window_bounds = array<i64: 1, 32>}, {pipeline_mode = #tpu.pipeline_mode<synchronous>, transform_indices = @transform_4, window_bounds = array<i64: 1, 32>}, {transform_indices = @transform_5, window_bounds = array<i64: 8, 32>}]} {
    %c0 = arith.constant 0 : index
    %c0_0 = arith.constant 0 : index
    %c0_1 = arith.constant 0 : index
    %0 = vector.load %arg1[%c0, %c0_0, %c0_1] : memref<8x8x32xf32, #tpu.memory_space<vmem>>, vector<8x8x32xf32>
    %1 = vector.shape_cast %0 : vector<8x8x32xf32> to vector<64x32xf32>
    %c0_2 = arith.constant 0 : index
    %c0_3 = arith.constant 0 : index
    %2 = vector.load %arg3[%c0_2, %c0_3] : memref<32x32xf32, #tpu.memory_space<vmem>>, vector<32x32xf32>
    %cst = arith.constant dense<0.000000e+00> : vector<64x32xf32>
    %3 = tpu.matmul %1, %2, %cst {dimension_numbers = #tpu.dot_dimension_numbers<[1], [0], [0], [1], [0, 0, 1, 1], [], []>} : vector<64x32xf32>, vector<32x32xf32>, vector<64x32xf32> -> vector<64x32xf32>
    %c0_4 = arith.constant 0 : index
    %c0_5 = arith.constant 0 : index
    %4 = vector.load %arg4[%c0_4, %c0_5] : memref<1x32xf32, #tpu.memory_space<vmem>>, vector<1x32xf32>
    %5 = vector.broadcast %4 : vector<1x32xf32> to vector<64x32xf32>
    %6 = arith.addf %3, %5 : vector<64x32xf32>
    %7 = math.tanh %6 : vector<64x32xf32>
    %8 = vector.shape_cast %7 : vector<64x32xf32> to vector<8x8x32xf32>
    %c0_6 = arith.constant 0 : index
    %c0_7 = arith.constant 0 : index
    %9 = vector.load %arg5[%c0_6, %c0_7] : memref<1x32xf32, #tpu.memory_space<vmem>>, vector<1x32xf32>
    %10 = vector.shape_cast %9 : vector<1x32xf32> to vector<1x1x32xf32>
    %11 = vector.broadcast %10 : vector<1x1x32xf32> to vector<8x8x32xf32>
    %12 = arith.mulf %8, %11 : vector<8x8x32xf32>
    %cst_8 = arith.constant dense<0.000000e+00> : vector<8x8xf32>
    %13 = vector.multi_reduction <add>, %12, %cst_8 [2] : vector<8x8x32xf32> to vector<8x8xf32>
    %14 = math.exp %13 : vector<8x8xf32>
    %c0_9 = arith.constant 0 : index
    %c0_10 = arith.constant 0 : index
    %15 = vector.load %arg2[%c0_9, %c0_10] : memref<8x8xf32, #tpu.memory_space<vmem>>, vector<8x8xf32>
    %16 = arith.mulf %14, %15 : vector<8x8xf32>
    %cst_11 = arith.constant dense<0.000000e+00> : vector<8xf32>
    %17 = vector.multi_reduction <add>, %16, %cst_11 [1] : vector<8x8xf32> to vector<8xf32>
    %18 = vector.shape_cast %17 : vector<8xf32> to vector<8x1xf32>
    %cst_12 = arith.constant 9.99999971E-10 : f32
    %19 = vector.broadcast %cst_12 : f32 to vector<8x1xf32>
    %20 = arith.addf %18, %19 : vector<8x1xf32>
    %21 = vector.broadcast %20 : vector<8x1xf32> to vector<8x8xf32>
    %22 = arith.divf %16, %21 : vector<8x8xf32>
    %23 = vector.shape_cast %22 : vector<8x8xf32> to vector<8x8x1xf32>
    %24 = vector.broadcast %23 : vector<8x8x1xf32> to vector<8x8x32xf32>
    %25 = arith.mulf %24, %0 : vector<8x8x32xf32>
    %cst_13 = arith.constant dense<0.000000e+00> : vector<8x32xf32>
    %26 = vector.multi_reduction <add>, %25, %cst_13 [1] : vector<8x8x32xf32> to vector<8x32xf32>
    %c0_14 = arith.constant 0 : index
    %c0_15 = arith.constant 0 : index
    %27 = vector.load %arg6[%c0_14, %c0_15] : memref<8x32xf32, #tpu.memory_space<vmem>>, vector<8x32xf32>
    tpu.vector_store %arg6[%c0_14, %c0_15], %26 {strides = array<i32>} : memref<8x32xf32, #tpu.memory_space<vmem>>, vector<8x32xf32>,
    return
  }
  func.func @transform_0(%arg0: i32) -> (i32, i32, i32) {
    %c0_i32 = arith.constant 0 : i32
    %c0_i32_0 = arith.constant 0 : i32
    %c0_i32_1 = arith.constant 0 : i32
    return %arg0, %c0_i32, %c0_i32_0 : i32, i32, i32
  }
  func.func @transform_1(%arg0: i32) -> (i32, i32) {
    %c0_i32 = arith.constant 0 : i32
    %c0_i32_0 = arith.constant 0 : i32
    return %arg0, %c0_i32 : i32, i32
  }
  func.func @transform_2(%arg0: i32) -> (i32, i32) {
    %c0_i32 = arith.constant 0 : i32
    %c0_i32_0 = arith.constant 0 : i32
    %c0_i32_1 = arith.constant 0 : i32
    return %c0_i32, %c0_i32_0 : i32, i32
  }
  func.func @transform_3(%arg0: i32) -> (i32, i32) {
    %c0_i32 = arith.constant 0 : i32
    %c0_i32_0 = arith.constant 0 : i32
    %c0_i32_1 = arith.constant 0 : i32
    return %c0_i32, %c0_i32_0 : i32, i32
  }
  func.func @transform_4(%arg0: i32) -> (i32, i32) {
    %c0_i32 = arith.constant 0 : i32
    %c0_i32_0 = arith.constant 0 : i32
    %c0_i32_1 = arith.constant 0 : i32
    return %c0_i32, %c0_i32_0 : i32, i32
  }
  func.func @transform_5(%arg0: i32) -> (i32, i32) {
    %c0_i32 = arith.constant 0 : i32
    %c0_i32_0 = arith.constant 0 : i32
    return %arg0, %c0_i32 : i32, i32
  }
}

</mosaic_0001>

<llo_original>
// kernel: tpu_custom_call.1
$region0: #{tpu_custom_call.1}
  #allocation0 [shape = 'u32[]', space=smem, size = 0x4, offset = 0x4, fixed_abs, tag = 'smem constant byte address 0x4 - core index']
  #allocation1 [shape = 'u32[144,128]{1,0:T(1,128)}', space=vmem, size = 0x12000, scoped, tag = 'internal scratch']
  %s0 = inlined_call_operand.hbm [shape: f32[16,8,32], index: 0, kind: input, shape index: {}]
  %s1 = inlined_call_operand.vmem [shape: f32[16,8], index: 1, kind: input, shape index: {}]
  %s2 = inlined_call_operand.hbm [shape: f32[32,32], index: 2, kind: input, shape index: {}]
  %s3 = inlined_call_operand.vmem [shape: f32[1,32], index: 3, kind: input, shape index: {}]
  %s4 = inlined_call_operand.vmem [shape: f32[1,32], index: 4, kind: input, shape index: {}]
  %s5 = inlined_call_operand.hbm [shape: f32[16,32], index: 5, kind: output, shape index: {}]
  %s6 = sld [smem:[#allocation0]]
  $region61: #{tpu_custom_call.1} parent=0
    _
  %s8 = ssub.s32 1, %s6
  %s9 = scalar_select 0, %s8, %s6
  $region1: #{tpu_custom_call.1} parent=0
    #allocation2 [shape = 'u8[65536]{0}', space=vmem, size = 0x10000, scoped, tag = 'input window, operand 0']
    #allocation3 [shape = 's32[2]{0}', space=sflag, size = 0x8, scoped, tag = 'scoped memory for tpu_custom_call.1']
    #allocation4 [shape = 's32[2]{0}', space=sflag, size = 0x8, scoped, tag = 'scoped memory for tpu_custom_call.1']
    #allocation5 [shape = 'u8[16384]{0}', space=vmem, size = 0x4000, scoped, tag = 'input window, operand 2, single buffered']
    #allocation6 [shape = 's32[1]{0}', space=sflag, size = 0x4, scoped, tag = 'scoped memory for tpu_custom_call.1']
    #allocation7 [shape = 'u8[8192]{0}', space=vmem, size = 0x2000, scoped, tag = 'output window, operand 0']
    %10 = vsyncpa [#allocation3], 0
    %s11 = scalar_lea.sflag [#allocation3], 1
    %12 = vsyncpa %s11, 0
    %13 = vsyncpa [#allocation6], 0
    %14 = vsyncpa [#allocation4], 0
    %s15 = scalar_lea.sflag [#allocation4], 1
    %16 = vsyncpa %s15, 0
    loop: start=0, step=1, limit=4
    $region2: #{tpu_custom_call.1} parent=1 // loop_pre_header
      _
    $region3: #{tpu_custom_call.1} parent=1 // loop_header
      %s18 = sphi 0, %s22
      %p19 = scmp.ge.s32.totalorder %s18, 4
      %s28 = sphi 0, %s30
      %s31 = sphi 0, %s28
      %s32 = sphi 0, %s31
      %s48 = sphi 0, %s32
      %s54 = sphi 0, %s56
      %s57 = sphi 0, %s54
      %s58 = sphi 0, %s57
      %s74 = sphi 0, %s58
      %s78 = sphi 0, %s78
      %s80 = sphi 0, %s78
      %s81 = sphi 0, %s80
      %s95 = sphi 0, %s81
      %s99 = sphi 0, %s99
      %s101 = sphi 0, %s99
      %s102 = sphi 0, %s101
      %s116 = sphi 0, %s102
      %s120 = sphi 0, %s120
      %s122 = sphi 0, %s120
      %s123 = sphi 0, %s122
      %s137 = sphi 0, %s123
      %s143 = sphi 0, %s145
      %s146 = sphi 0, %s143
      %s147 = sphi 0, %s146
      %s163 = sphi 0, %s147
    $region4: #{tpu_custom_call.1} parent=1 // loop_header_branch
      %21 = sbr.rel (%p19) target = $region8
    $region5: #{tpu_custom_call.1} parent=1 // loop_body
      %s23 = ssub.s32 %s18, 1
      %s24 = ssub.s32 %s18, 2
      %s25 = sadd.s32 %s18, 1
      %s26 = ssub.s32 %s18, %s25
      %p27 = scmp.eq.s32.totalorder %s26, 0
      %s29 = sadd.s32 %s28, 1
      %s30 = scalar_select %p27, %s28, %s29
      %p33 = pneg %p27
      %p34 = scmp.eq.s32.totalorder %s18, 1
      %p35 = por %p33, %p34
      %p36 = scmp.ne.s32.totalorder %s28, %s31
      %p37 = scmp.eq.s32.totalorder %s18, 0
      %p38 = por %p36, %p37
      %p39 = scmp.ne.s32.totalorder %s28, %s31
      %p40 = scmp.eq.s32.totalorder %s23, 1
      %p41 = por %p39, %p40
      %p42 = scmp.ne.s32.totalorder %s31, %s32
      %p43 = scmp.eq.s32.totalorder %s23, 0
      %p44 = por %p42, %p43
      %p45 = scmp.ne.s32.totalorder %s31, %s32
      %p46 = scmp.eq.s32.totalorder %s24, 1
      %p47 = por %p45, %p46
      %p49 = scmp.ne.s32.totalorder %s32, %s48
      %p50 = scmp.eq.s32.totalorder %s24, 0
      %p51 = por %p49, %p50
      %s52 = ssub.s32 %s18, %s25
      %p53 = scmp.eq.s32.totalorder %s52, 0
      %s55 = sadd.s32 %s54, 1
      %s56 = scalar_select %p53, %s54, %s55
      %p59 = pneg %p53
      %p60 = scmp.eq.s32.totalorder %s18, 1
      %p61 = por %p59, %p60
      %p62 = scmp.ne.s32.totalorder %s54, %s57
      %p63 = scmp.eq.s32.totalorder %s18, 0
      %p64 = por %p62, %p63
      %p65 = scmp.ne.s32.totalorder %s54, %s57
      %p66 = scmp.eq.s32.totalorder %s23, 1
      %p67 = por %p65, %p66
      %p68 = scmp.ne.s32.totalorder %s57, %s58
      %p69 = scmp.eq.s32.totalorder %s23, 0
      %p70 = por %p68, %p69
      %p71 = scmp.ne.s32.totalorder %s57, %s58
      %p72 = scmp.eq.s32.totalorder %s24, 1
      %p73 = por %p71, %p72
      %p75 = scmp.ne.s32.totalorder %s58, %s74
      %p76 = scmp.eq.s32.totalorder %s24, 0
      %p77 = por %p75, %p76
      %s79 = sadd.s32 %s78, 1
      %p82 = scmp.eq.s32.totalorder %s18, 1
      %p83 = scmp.ne.s32.totalorder %s78, %s80
      %p84 = scmp.eq.s32.totalorder %s18, 0
      %p85 = por %p83, %p84
      %p86 = scmp.ne.s32.totalorder %s78, %s80
      %p87 = scmp.eq.s32.totalorder %s23, 1
      %p88 = por %p86, %p87
      %p89 = scmp.ne.s32.totalorder %s80, %s81
      %p90 = scmp.eq.s32.totalorder %s23, 0
      %p91 = por %p89, %p90
      %p92 = scmp.ne.s32.totalorder %s80, %s81
      %p93 = scmp.eq.s32.totalorder %s24, 1
      %p94 = por %p92, %p93
      %p96 = scmp.ne.s32.totalorder %s81, %s95
      %p97 = scmp.eq.s32.totalorder %s24, 0
      %p98 = por %p96, %p97
      %s100 = sadd.s32 %s99, 1
      %p103 = scmp.eq.s32.totalorder %s18, 1
      %p104 = scmp.ne.s32.totalorder %s99, %s101
      %p105 = scmp.eq.s32.totalorder %s18, 0
      %p106 = por %p104, %p105
      %p107 = scmp.ne.s32.totalorder %s99, %s101
      %p108 = scmp.eq.s32.totalorder %s23, 1
      %p109 = por %p107, %p108
      %p110 = scmp.ne.s32.totalorder %s101, %s102
      %p111 = scmp.eq.s32.totalorder %s23, 0
      %p112 = por %p110, %p111
      %p113 = scmp.ne.s32.totalorder %s101, %s102
      %p114 = scmp.eq.s32.totalorder %s24, 1
      %p115 = por %p113, %p114
      %p117 = scmp.ne.s32.totalorder %s102, %s116
      %p118 = scmp.eq.s32.totalorder %s24, 0
      %p119 = por %p117, %p118
      %s121 = sadd.s32 %s120, 1
      %p124 = scmp.eq.s32.totalorder %s18, 1
      %p125 = scmp.ne.s32.totalorder %s120, %s122
      %p126 = scmp.eq.s32.totalorder %s18, 0
      %p127 = por %p125, %p126
      %p128 = scmp.ne.s32.totalorder %s120, %s122
      %p129 = scmp.eq.s32.totalorder %s23, 1
      %p130 = por %p128, %p129
      %p131 = scmp.ne.s32.totalorder %s122, %s123
      %p132 = scmp.eq.s32.totalorder %s23, 0
      %p133 = por %p131, %p132
      %p134 = scmp.ne.s32.totalorder %s122, %s123
      %p135 = scmp.eq.s32.totalorder %s24, 1
      %p136 = por %p134, %p135
      %p138 = scmp.ne.s32.totalorder %s123, %s137
      %p139 = scmp.eq.s32.totalorder %s24, 0
      %p140 = por %p138, %p139
      %s141 = ssub.s32 %s18, %s25
      %p142 = scmp.eq.s32.totalorder %s141, 0
      %s144 = sadd.s32 %s143, 1
      %s145 = scalar_select %p142, %s143, %s144
      %p148 = pneg %p142
      %p149 = scmp.eq.s32.totalorder %s18, 1
      %p150 = por %p148, %p149
      %p151 = scmp.ne.s32.totalorder %s143, %s146
      %p152 = scmp.eq.s32.totalorder %s18, 0
      %p153 = por %p151, %p152
      %p154 = scmp.ne.s32.totalorder %s143, %s146
      %p155 = scmp.eq.s32.totalorder %s23, 1
      %p156 = por %p154, %p155
      %p157 = scmp.ne.s32.totalorder %s146, %s147
      %p158 = scmp.eq.s32.totalorder %s23, 0
      %p159 = por %p157, %p158
      %p160 = scmp.ne.s32.totalorder %s146, %s147
      %p161 = scmp.eq.s32.totalorder %s24, 1
      %p162 = por %p160, %p161
      %p164 = scmp.ne.s32.totalorder %s147, %s163
      %p165 = scmp.eq.s32.totalorder %s24, 0
      %p166 = por %p164, %p165
      %p167 = scmp.le.s32.totalorder 1, %s18
      %p168 = scmp.lt.s32.totalorder %s18, 3
      %p169 = pnand %p167, %p168
      %p170 = pneg %p169
      // Predicated region
      $region9: #{tpu_custom_call.1} parent=5 // pred_check
        _
      $region10: #{tpu_custom_call.1} parent=5 // pred_check_branch
        %172 = sbr.rel (%p169) target = $region12
      $region11: #{tpu_custom_call.1} parent=5 // pred_region
        %s173 = ssub.s32 %s18, 1
        // Predicated region
        $region13: #{tpu_custom_call.1} parent=11 // pred_check
          %p174 = pneg %p91
        $region14: #{tpu_custom_call.1} parent=11 // pred_check_branch
          %176 = sbr.rel (%p174) target = $region16
        $region15: #{tpu_custom_call.1} parent=11 // pred_region
          %s178 = ssub.s32 512, 512
          %179 = vsyncadd [#allocation6], %s178
          %s180 = sshll.u32 [#allocation5], 4
          %s181 = int_to_ptr.vmem [resolvable:$true] %s180
          %186 = dma.hbm_to_vmem [thread:$0]  %s2, 512, %s181, [#allocation6], 128, 128, 8
        $region16: #{tpu_custom_call.1} parent=11 // pred_fallthru
          _
        // Predicated region
        $region17: #{tpu_custom_call.1} parent=11 // pred_check
          %p187 = pneg %p112
        $region18: #{tpu_custom_call.1} parent=11 // pred_check_branch
          %189 = sbr.rel (%p187) target = $region20
        $region19: #{tpu_custom_call.1} parent=11 // pred_region
          _
        $region20: #{tpu_custom_call.1} parent=11 // pred_fallthru
          _
        // Predicated region
        $region21: #{tpu_custom_call.1} parent=11 // pred_check
          %p190 = pneg %p133
        $region22: #{tpu_custom_call.1} parent=11 // pred_check_branch
          %192 = sbr.rel (%p190) target = $region24
        $region23: #{tpu_custom_call.1} parent=11 // pred_region
          _
        $region24: #{tpu_custom_call.1} parent=11 // pred_fallthru
          _
      $region12: #{tpu_custom_call.1} parent=5 // pred_fallthru
        _
      %p193 = scmp.lt.s32.totalorder %s18, 2
      // Predicated region
      $region25: #{tpu_custom_call.1} parent=5 // pred_check
        %p194 = pneg %p193
      $region26: #{tpu_custom_call.1} parent=5 // pred_check_branch
        %196 = sbr.rel (%p194) target = $region28
      $region27: #{tpu_custom_call.1} parent=5 // pred_region
        // Predicated region
        $region29: #{tpu_custom_call.1} parent=27 // pred_check
          %p197 = pneg %p38
        $region30: #{tpu_custom_call.1} parent=27 // pred_check_branch
          %199 = sbr.rel (%p197) target = $region32
        $region31: #{tpu_custom_call.1} parent=27 // pred_region
          %s200 = sand.u32 %s28, 1
          %s201 = scalar_lea.sflag [#allocation3], %s200
          %s202 = sand.u32 %s28, 1
          %s203 = smul.addr %s202, 64
          %s204 = scalar_lea.vmem [#allocation2], %s203
          %s205 = smul.u32 8, %s18
          %s207 = ssub.s32 1024, 1024
          %208 = vsyncadd %s201, %s207
          %s209 = smul.addr %s205, 128
          %s210 = scalar_lea.hbm %s0, %s209
          %s211 = sshll.u32 %s204, 4
          %s212 = int_to_ptr.vmem [resolvable:$true] %s211
          %217 = dma.hbm_to_vmem [thread:$0]  %s210, 1024, %s212, %s201, 128, 128, 8
        $region32: #{tpu_custom_call.1} parent=27 // pred_fallthru
          _
        // Predicated region
        $region33: #{tpu_custom_call.1} parent=27 // pred_check
          %p218 = pneg %p64
        $region34: #{tpu_custom_call.1} parent=27 // pred_check_branch
          %220 = sbr.rel (%p218) target = $region36
        $region35: #{tpu_custom_call.1} parent=27 // pred_region
          %p221 = scmp.lt.s32.totalorder %s18, 1
          %s222 = scalar_select %p221, %s18, 1
          %s223 = smul.addr %s222, 8
          %s224 = scalar_lea.vmem %s1, %s223
        $region36: #{tpu_custom_call.1} parent=27 // pred_fallthru
          _
      $region28: #{tpu_custom_call.1} parent=5 // pred_fallthru
        _
      %p225 = scmp.le.s32.totalorder 1, %s18
      %p226 = scmp.lt.s32.totalorder %s18, 3
      %p227 = pnand %p225, %p226
      %p228 = pneg %p227
      // Predicated region
      $region37: #{tpu_custom_call.1} parent=5 // pred_check
        _
      $region38: #{tpu_custom_call.1} parent=5 // pred_check_branch
        %230 = sbr.rel (%p227) target = $region40
      $region39: #{tpu_custom_call.1} parent=5 // pred_region
        %s231 = ssub.s32 %s18, 1
        %s232 = sand.u32 %s31, 1
        %s233 = scalar_lea.sflag [#allocation3], %s232
        %s234 = sand.u32 %s31, 1
        %s235 = smul.addr %s234, 64
        %s236 = scalar_lea.vmem [#allocation2], %s235
        // Predicated region
        $region41: #{tpu_custom_call.1} parent=39 // pred_check
          %p237 = pneg %p44
        $region42: #{tpu_custom_call.1} parent=39 // pred_check_branch
          %239 = sbr.rel (%p237) target = $region44
        $region43: #{tpu_custom_call.1} parent=39 // pred_region
          %240 = dma.done %s233, 1024
        $region44: #{tpu_custom_call.1} parent=39 // pred_fallthru
          _
        // Predicated region
        $region45: #{tpu_custom_call.1} parent=39 // pred_check
          %p241 = pneg %p91
        $region46: #{tpu_custom_call.1} parent=39 // pred_check_branch
          %243 = sbr.rel (%p241) target = $region48
        $region47: #{tpu_custom_call.1} parent=39 // pred_region
          %244 = dma.done [#allocation6], 512
        $region48: #{tpu_custom_call.1} parent=39 // pred_fallthru
          _
        %s245 = sand.u32 %s31, 1
        %s246 = scalar_lea.sflag [#allocation3], %s245
        %s247 = sand.u32 %s31, 1
        %s248 = smul.addr %s247, 64
        %s249 = scalar_lea.vmem [#allocation2], %s248
        %p250 = pneg %p44
        %p251 = pneg %p41
        %p252 = scmp.lt.s32.totalorder %s23, 1
        %s253 = scalar_select %p252, %s23, 1
        %s254 = smul.addr %s253, 8
        %s255 = scalar_lea.vmem %s1, %s254
        %p256 = pneg %p70
        %p257 = pneg %p67
        %p258 = pneg %p91
        %p259 = pneg %p88
        %p260 = pneg %p112
        %p261 = pneg %p109
        %p262 = pneg %p133
        %p263 = pneg %p130
        %p264 = pneg %p159
        %p265 = pneg %p156
        %s266 = sand.u32 %s146, 1
        %s267 = scalar_lea.sflag [#allocation4], %s266
        %s268 = sand.u32 %s146, 1
        %s269 = smul.addr %s268, 8
        %s270 = scalar_lea.vmem [#allocation7], %s269
        %s271 = smul.u32 8, %s23
        %p272 = scmp.lt.s32.totalorder %s23, 1
        %s273 = scalar_select %p272, %s23, 1
        %s274 = smul.addr %s273, 8
        %s275 = scalar_lea.vmem %s1, %s274
        %v276 = vld [vmem:[%s236] sm:$0xff]
        %v277 = vld [vmem:[%s236 + $0x8] sm:$0xff]
        %v278 = vld [vmem:[%s236 + $0x10] sm:$0xff]
        %v279 = vld [vmem:[%s236 + $0x18] sm:$0xff]
        %v280 = vld [vmem:[%s236 + $0x20] sm:$0xff]
        %v281 = vld [vmem:[%s236 + $0x28] sm:$0xff]
        %v282 = vld [vmem:[%s236 + $0x30] sm:$0xff]
        %v283 = vld [vmem:[%s236 + $0x38] sm:$0xff]
        %v284 = vld [vmem:[#allocation5] sm:$0xff]
        %v285 = vld [vmem:[#allocation5 + $0x8] sm:$0xff]
        %v286 = vld [vmem:[#allocation5 + $0x10] sm:$0xff]
        %v287 = vld [vmem:[#allocation5 + $0x18] sm:$0xff]
        %v288 = vld [vmem:[%s3] sm:$0x1]
        %v290 = vlaneseq
        %v291 = vshrl.u32 %v290, 7
        %v292 = vsub.s32 0, %v291
        %v293 = vrot.slane %v288, %v292
        %vm295 = vcmask 261120
        %v297 = vsel %vm295, %v276, 0
        %v300 = vsel %vm295, %v277, 0
        %v303 = vsel %vm295, %v278, 0
        %v306 = vsel %vm295, %v279, 0
        %v309 = vsel %vm295, %v280, 0
        %v312 = vsel %vm295, %v281, 0
        %v315 = vsel %vm295, %v282, 0
        %v318 = vsel %vm295, %v283, 0
        %320 = vmatprep.subr.mxu0 0.0
        %321 = vmatpush1.msra.mxu0 0.0
        %322 = vmatprep.subr.mxu0 0.0
        %323 = vmatpush1.msra.mxu0 0.0
        %324 = vmatprep.subr.mxu0 0.0
        %325 = vmatpush1.msra.mxu0 0.0
        %326 = vmatprep.subr.mxu0 0.0
        %327 = vmatpush1.msra.mxu0 0.0
        %328 = vmatprep.subr.mxu0 0.0
        %329 = vmatpush1.msra.mxu0 0.0
        %330 = vmatprep.subr.mxu0 0.0
        %331 = vmatpush1.msra.mxu0 0.0
        %332 = vmatprep.subr.mxu0 0.0
        %333 = vmatpush1.msra.mxu0 0.0
        %334 = vmatprep.subr.mxu0 0.0
        %335 = vmatpush1.msra.mxu0 0.0
        %336 = vmatprep.subr.mxu0 0.0
        %337 = vmatpush1.msra.mxu0 0.0
        %338 = vmatprep.subr.mxu0 0.0
        %339 = vmatpush1.msra.mxu0 0.0
        %340 = vmatprep.subr.mxu0 0.0
        %341 = vmatpush1.msra.mxu0 0.0
        %342 = vmatprep.subr.mxu0 0.0
        %343 = vmatpush1.msra.mxu0 0.0
        %344 = vmatprep.subr.mxu0 0.0
        %345 = vmatpush1.msra.mxu0 %v287
        %346 = vmatprep.subr.mxu0 0.0
        %347 = vmatpush1.msra.mxu0 %v286
        %348 = vmatprep.subr.mxu0 0.0
        %349 = vmatpush1.msra.mxu0 %v285
        %350 = vmatprep.subr.mxu0 0.0
        %351 = vmatpush1.msra.mxu0 %v284
        %352 = vmatprep.subr.mxu0 0.0
        %353 = vmatpush2.msra.mxu0 0.0
        %354 = vmatprep.subr.mxu0 0.0
        %355 = vmatpush2.msra.mxu0 0.0
        %356 = vmatprep.subr.mxu0 0.0
        %357 = vmatpush2.msra.mxu0 0.0
        %358 = vmatprep.subr.mxu0 0.0
        %359 = vmatpush2.msra.mxu0 0.0
        %360 = vmatprep.subr.mxu0 0.0
        %361 = vmatpush2.msra.mxu0 0.0
        %362 = vmatprep.subr.mxu0 0.0
        %363 = vmatpush2.msra.mxu0 0.0
        %364 = vmatprep.subr.mxu0 0.0
        %365 = vmatpush2.msra.mxu0 0.0
        %366 = vmatprep.subr.mxu0 0.0
        %367 = vmatpush2.msra.mxu0 0.0
        %368 = vmatprep.subr.mxu0 0.0
        %369 = vmatpush2.msra.mxu0 0.0
        %370 = vmatprep.subr.mxu0 0.0
        %371 = vmatpush2.msra.mxu0 0.0
        %372 = vmatprep.subr.mxu0 0.0
        %373 = vmatpush2.msra.mxu0 0.0
        %374 = vmatprep.subr.mxu0 0.0
        %375 = vmatpush2.msra.mxu0 0.0
        %376 = vmatprep.subr.mxu0 0.0
        %377 = vmatpush2.msra.mxu0 0.0
        %378 = vmatprep.subr.mxu0 0.0
        %379 = vmatpush2.msra.mxu0 0.0
        %380 = vmatprep.subr.mxu0 0.0
        %381 = vmatpush2.msra.mxu0 0.0
        %382 = vmatprep.subr.mxu0 0.0
        %383 = vmatpush2.msra.mxu0 0.0
        %384 = vmatprep.mubr.f32.mxu0 0.0
        %385 = vmatmul.mubr.f32.gmra.mxu0 %v297
        %v386 = vpop.f32.mrf.mxu0
        %v387 = vadd.f32 %v293, %v386
        %v388 = vpop.f32.mrf.mxu0
        %389 = vmatprep.mubr.f32.mxu0 0.0
        %390 = vmatmul.mubr.f32.gmra.mxu0 %v300
        %v391 = vpop.f32.mrf.mxu0
        %v392 = vadd.f32 %v293, %v391
        %v393 = vpop.f32.mrf.mxu0
        %394 = vmatprep.mubr.f32.mxu0 0.0
        %395 = vmatmul.mubr.f32.gmra.mxu0 %v303
        %v396 = vpop.f32.mrf.mxu0
        %v397 = vadd.f32 %v293, %v396
        %v398 = vpop.f32.mrf.mxu0
        %399 = vmatprep.mubr.f32.mxu0 0.0
        %400 = vmatmul.mubr.f32.gmra.mxu0 %v306
        %v401 = vpop.f32.mrf.mxu0
        %v402 = vadd.f32 %v293, %v401
        %v403 = vpop.f32.mrf.mxu0
        %404 = vmatprep.mubr.f32.mxu0 0.0
        %405 = vmatmul.mubr.f32.gmra.mxu0 %v309
        %v406 = vpop.f32.mrf.mxu0
        %v407 = vadd.f32 %v293, %v406
        %v408 = vpop.f32.mrf.mxu0
        %409 = vmatprep.mubr.f32.mxu0 0.0
        %410 = vmatmul.mubr.f32.gmra.mxu0 %v312
        %v411 = vpop.f32.mrf.mxu0
        %v412 = vadd.f32 %v293, %v411
        %v413 = vpop.f32.mrf.mxu0
        %414 = vmatprep.mubr.f32.mxu0 0.0
        %415 = vmatmul.mubr.f32.gmra.mxu0 %v315
        %v416 = vpop.f32.mrf.mxu0
        %v417 = vadd.f32 %v293, %v416
        %v418 = vpop.f32.mrf.mxu0
        %419 = vmatprep.mubr.f32.mxu0 0.0
        %420 = vmatmul.mubr.f32.gmra.mxu0 %v318
        %v421 = vpop.f32.mrf.mxu0
        %v422 = vadd.f32 %v293, %v421
        %v423 = vpop.f32.mrf.mxu0
        %424 = vdwg.mxu0
        %v425 = vtanh.pop %v387
        %v426 = vtanh.pop %v392
        %v427 = vtanh.pop %v397
        %v428 = vtanh.pop %v402
        %v429 = vtanh.pop %v407
        %v430 = vtanh.pop %v412
        %v431 = vtanh.pop %v417
        %v432 = vtanh.pop %v422
        %v433 = vld [vmem:[%s4] sm:$0x1]
        %v435 = vlaneseq
        %v436 = vshrl.u32 %v435, 7
        %v437 = vsub.s32 0, %v436
        %v438 = vrot.slane %v433, %v437
        %v440 = vmul.f32 %v425, %v438
        %v441 = vmul.f32 %v426, %v438
        %v442 = vmul.f32 %v427, %v438
        %v443 = vmul.f32 %v428, %v438
        %v444 = vmul.f32 %v429, %v438
        %v445 = vmul.f32 %v430, %v438
        %v446 = vmul.f32 %v431, %v438
        %v447 = vmul.f32 %v432, %v438
        %v448 = vsel %vm295, %v440, 0.0
        %449 = vadd.xlane.f32.xlu0 %v448
        %v450 = vpop.xlane.xlu0 %449
        %v451 = vsel %vm295, %v441, 0.0
        %452 = vadd.xlane.f32.xlu0 %v451
        %v453 = vpop.xlane.xlu0 %452
        %v454 = vsel %vm295, %v442, 0.0
        %455 = vadd.xlane.f32.xlu0 %v454
        %v456 = vpop.xlane.xlu0 %455
        %v457 = vsel %vm295, %v443, 0.0
        %458 = vadd.xlane.f32.xlu0 %v457
        %v459 = vpop.xlane.xlu0 %458
        %v460 = vsel %vm295, %v444, 0.0
        %461 = vadd.xlane.f32.xlu0 %v460
        %v462 = vpop.xlane.xlu0 %461
        %v463 = vsel %vm295, %v445, 0.0
        %464 = vadd.xlane.f32.xlu0 %v463
        %v465 = vpop.xlane.xlu0 %464
        %v466 = vsel %vm295, %v446, 0.0
        %467 = vadd.xlane.f32.xlu0 %v466
        %v468 = vpop.xlane.xlu0 %467
        %v469 = vsel %vm295, %v447, 0.0
        %470 = vadd.xlane.f32.xlu0 %v469
        %v471 = vpop.xlane.xlu0 %470
        %v472 = vmul.f32 %v450, 1.442695
        %v473 = vpow.pop %v472
        %v474 = vmul.f32 %v453, 1.442695
        %v475 = vpow.pop %v474
        %v476 = vmul.f32 %v456, 1.442695
        %v477 = vpow.pop %v476
        %v478 = vmul.f32 %v459, 1.442695
        %v479 = vpow.pop %v478
        %v480 = vmul.f32 %v462, 1.442695
        %v481 = vpow.pop %v480
        %v482 = vmul.f32 %v465, 1.442695
        %v483 = vpow.pop %v482
        %v484 = vmul.f32 %v468, 1.442695
        %v485 = vpow.pop %v484
        %v486 = vmul.f32 %v471, 1.442695
        %v487 = vpow.pop %v486
        %v488 = vld [vmem:[%s275] sm:$0xff]
        %v490 = vlaneseq
        %v491 = vshrl.u32 %v490, 7
        %v492 = vsub.s32 0, %v491
        %v493 = vrot.slane %v488, %v492
        %495 = vbcast.lane.b32.xlu0 %v493, 256
        %v496 = vpop.permute.xlu0 %495
        %v497 = vlaneseq
        %v498 = vshrl.u32 %v497, 7
        %v499 = vsub.s32 1, %v498
        %v500 = vrot.slane %v488, %v499
        %502 = vbcast.lane.b32.xlu0 %v500, 256
        %v503 = vpop.permute.xlu0 %502
        %v504 = vlaneseq
        %v505 = vshrl.u32 %v504, 7
        %v506 = vsub.s32 2, %v505
        %v507 = vrot.slane %v488, %v506
        %509 = vbcast.lane.b32.xlu0 %v507, 256
        %v510 = vpop.permute.xlu0 %509
        %v511 = vlaneseq
        %v512 = vshrl.u32 %v511, 7
        %v513 = vsub.s32 3, %v512
        %v514 = vrot.slane %v488, %v513
        %516 = vbcast.lane.b32.xlu0 %v514, 256
        %v517 = vpop.permute.xlu0 %516
        %v518 = vlaneseq
        %v519 = vshrl.u32 %v518, 7
        %v520 = vsub.s32 4, %v519
        %v521 = vrot.slane %v488, %v520
        %523 = vbcast.lane.b32.xlu0 %v521, 256
        %v524 = vpop.permute.xlu0 %523
        %v525 = vlaneseq
        %v526 = vshrl.u32 %v525, 7
        %v527 = vsub.s32 5, %v526
        %v528 = vrot.slane %v488, %v527
        %530 = vbcast.lane.b32.xlu0 %v528, 256
        %v531 = vpop.permute.xlu0 %530
        %v532 = vlaneseq
        %v533 = vshrl.u32 %v532, 7
        %v534 = vsub.s32 6, %v533
        %v535 = vrot.slane %v488, %v534
        %537 = vbcast.lane.b32.xlu0 %v535, 256
        %v538 = vpop.permute.xlu0 %537
        %v539 = vlaneseq
        %v540 = vshrl.u32 %v539, 7
        %v541 = vsub.s32 7, %v540
        %v542 = vrot.slane %v488, %v541
        %544 = vbcast.lane.b32.xlu0 %v542, 256
        %v545 = vpop.permute.xlu0 %544
        %v554 = vmul.f32 %v473, %v496
        %v555 = vmul.f32 %v475, %v503
        %v556 = vmul.f32 %v477, %v510
        %v557 = vmul.f32 %v479, %v517
        %v558 = vmul.f32 %v481, %v524
        %v559 = vmul.f32 %v483, %v531
        %v560 = vmul.f32 %v485, %v538
        %v561 = vmul.f32 %v487, %v545
        %570 = vset.pattern.permute.xlu0 0
        %571 = vperm.xlu0 %570, %v554
        %v572 = vpop.permute.xlu0 %571
        %573 = vset.pattern.permute.xlu0 0
        %574 = vperm.xlu0 %573, %v555
        %v575 = vpop.permute.xlu0 %574
        %576 = vset.pattern.permute.xlu0 0
        %577 = vperm.xlu0 %576, %v556
        %v578 = vpop.permute.xlu0 %577
        %579 = vset.pattern.permute.xlu0 0
        %580 = vperm.xlu0 %579, %v557
        %v581 = vpop.permute.xlu0 %580
        %582 = vset.pattern.permute.xlu0 0
        %583 = vperm.xlu0 %582, %v558
        %v584 = vpop.permute.xlu0 %583
        %585 = vset.pattern.permute.xlu0 0
        %586 = vperm.xlu0 %585, %v559
        %v587 = vpop.permute.xlu0 %586
        %588 = vset.pattern.permute.xlu0 0
        %589 = vperm.xlu0 %588, %v560
        %v590 = vpop.permute.xlu0 %589
        %591 = vset.pattern.permute.xlu0 0
        %592 = vperm.xlu0 %591, %v561
        %v593 = vpop.permute.xlu0 %592
        %v594 = vlaneseq
        %v595 = vand.u32 %v594, 127
        %v596 = vlaneseq
        %v597 = vshrl.u32 %v596, 7
        %v598 = vsub.s32 %v595, %v597
        %v599 = vrot.slane %v572, %v598
        %v600 = vlaneseq
        %v601 = vshrl.u32 %v600, 7
        %v602 = vsub.s32 %v595, %v601
        %v603 = vrot.slane %v575, %v602
        %v604 = vlaneseq
        %v605 = vshrl.u32 %v604, 7
        %v606 = vsub.s32 %v595, %v605
        %v607 = vrot.slane %v578, %v606
        %v608 = vlaneseq
        %v609 = vshrl.u32 %v608, 7
        %v610 = vsub.s32 %v595, %v609
        %v611 = vrot.slane %v581, %v610
        %v612 = vlaneseq
        %v613 = vshrl.u32 %v612, 7
        %v614 = vsub.s32 %v595, %v613
        %v615 = vrot.slane %v584, %v614
        %v616 = vlaneseq
        %v617 = vshrl.u32 %v616, 7
        %v618 = vsub.s32 %v595, %v617
        %v619 = vrot.slane %v587, %v618
        %v620 = vlaneseq
        %v621 = vshrl.u32 %v620, 7
        %v622 = vsub.s32 %v595, %v621
        %v623 = vrot.slane %v590, %v622
        %v624 = vlaneseq
        %v625 = vshrl.u32 %v624, 7
        %v626 = vsub.s32 %v595, %v625
        %v627 = vrot.slane %v593, %v626
        %vm628 = vcmask 1041409
        %v629 = vsel %vm628, %v603, %v599
        %vm630 = vcmask 1042434
        %v631 = vsel %vm630, %v607, %v629
        %vm632 = vcmask 1043459
        %v633 = vsel %vm632, %v611, %v631
        %vm634 = vcmask 1044484
        %v635 = vsel %vm634, %v615, %v633
        %vm636 = vcmask 1045509
        %v637 = vsel %vm636, %v619, %v635
        %vm638 = vcmask 1046534
        %v639 = vsel %vm638, %v623, %v637
        %vm640 = vcmask 1047559
        %v641 = vsel %vm640, %v627, %v639
        %vm643 = vcmask 64512
        %v644 = vsel %vm643, %v641, 0.0
        %645 = vadd.xlane.f32.xlu0 %v644
        %v646 = vpop.xlane.xlu0 %645
        %v647 = vadd.f32 %v646, 1e-09
        %v649 = vlaneseq
        %v650 = vshrl.u32 %v649, 7
        %v651 = vsub.s32 0, %v650
        %v652 = vrot.slane %v647, %v651
        %v653 = vlaneseq
        %v654 = vshrl.u32 %v653, 7
        %v655 = vsub.s32 1, %v654
        %v656 = vrot.slane %v647, %v655
        %v657 = vlaneseq
        %v658 = vshrl.u32 %v657, 7
        %v659 = vsub.s32 2, %v658
        %v660 = vrot.slane %v647, %v659
        %v661 = vlaneseq
        %v662 = vshrl.u32 %v661, 7
        %v663 = vsub.s32 3, %v662
        %v664 = vrot.slane %v647, %v663
        %v665 = vlaneseq
        %v666 = vshrl.u32 %v665, 7
        %v667 = vsub.s32 4, %v666
        %v668 = vrot.slane %v647, %v667
        %v669 = vlaneseq
        %v670 = vshrl.u32 %v669, 7
        %v671 = vsub.s32 5, %v670
        %v672 = vrot.slane %v647, %v671
        %v673 = vlaneseq
        %v674 = vshrl.u32 %v673, 7
        %v675 = vsub.s32 6, %v674
        %v676 = vrot.slane %v647, %v675
        %v677 = vlaneseq
        %v678 = vshrl.u32 %v677, 7
        %v679 = vsub.s32 7, %v678
        %v680 = vrot.slane %v647, %v679
        %v689 = vrcp.pop %v652
        %v690 = vmul.f32 %v554, %v689
        %v691 = vrcp.pop %v656
        %v692 = vmul.f32 %v555, %v691
        %v693 = vrcp.pop %v660
        %v694 = vmul.f32 %v556, %v693
        %v695 = vrcp.pop %v664
        %v696 = vmul.f32 %v557, %v695
        %v697 = vrcp.pop %v668
        %v698 = vmul.f32 %v558, %v697
        %v699 = vrcp.pop %v672
        %v700 = vmul.f32 %v559, %v699
        %v701 = vrcp.pop %v676
        %v702 = vmul.f32 %v560, %v701
        %v703 = vrcp.pop %v680
        %v704 = vmul.f32 %v561, %v703
        %706 = vset.pattern.permute.xlu0 0
        %707 = vperm.xlu0 %706, %v690
        %v708 = vpop.permute.xlu0 %707
        %711 = vset.pattern.permute.xlu0 0
        %712 = vperm.xlu0 %711, %v692
        %v713 = vpop.permute.xlu0 %712
        %716 = vset.pattern.permute.xlu0 0
        %717 = vperm.xlu0 %716, %v694
        %v718 = vpop.permute.xlu0 %717
        %721 = vset.pattern.permute.xlu0 0
        %722 = vperm.xlu0 %721, %v696
        %v723 = vpop.permute.xlu0 %722
        %726 = vset.pattern.permute.xlu0 0
        %727 = vperm.xlu0 %726, %v698
        %v728 = vpop.permute.xlu0 %727
        %731 = vset.pattern.permute.xlu0 0
        %732 = vperm.xlu0 %731, %v700
        %v733 = vpop.permute.xlu0 %732
        %736 = vset.pattern.permute.xlu0 0
        %737 = vperm.xlu0 %736, %v702
        %v738 = vpop.permute.xlu0 %737
        %741 = vset.pattern.permute.xlu0 0
        %742 = vperm.xlu0 %741, %v704
        %v743 = vpop.permute.xlu0 %742
        %v745 = vmul.f32 %v708, %v276
        %v746 = vmul.f32 %v713, %v277
        %v747 = vmul.f32 %v718, %v278
        %v748 = vmul.f32 %v723, %v279
        %v749 = vmul.f32 %v728, %v280
        %v750 = vmul.f32 %v733, %v281
        %v751 = vmul.f32 %v738, %v282
        %v752 = vmul.f32 %v743, %v283
        %v753 = vsel %vm295, %v745, 0.0
        %v754 = vrot.slane %v753, 4
        %v755 = vadd.f32 %v753, %v754
        %v756 = vrot.slane %v755, 2
        %v757 = vadd.f32 %v755, %v756
        %v758 = vrot.slane %v757, 1
        %v759 = vadd.f32 %v757, %v758
        %v760 = vsel %vm295, %v746, 0.0
        %v761 = vrot.slane %v760, 4
        %v762 = vadd.f32 %v760, %v761
        %v763 = vrot.slane %v762, 2
        %v764 = vadd.f32 %v762, %v763
        %v765 = vrot.slane %v764, 1
        %v766 = vadd.f32 %v764, %v765
        %v767 = vsel %vm295, %v747, 0.0
        %v768 = vrot.slane %v767, 4
        %v769 = vadd.f32 %v767, %v768
        %v770 = vrot.slane %v769, 2
        %v771 = vadd.f32 %v769, %v770
        %v772 = vrot.slane %v771, 1
        %v773 = vadd.f32 %v771, %v772
        %v774 = vsel %vm295, %v748, 0.0
        %v775 = vrot.slane %v774, 4
        %v776 = vadd.f32 %v774, %v775
        %v777 = vrot.slane %v776, 2
        %v778 = vadd.f32 %v776, %v777
        %v779 = vrot.slane %v778, 1
        %v780 = vadd.f32 %v778, %v779
        %v781 = vsel %vm295, %v749, 0.0
        %v782 = vrot.slane %v781, 4
        %v783 = vadd.f32 %v781, %v782
        %v784 = vrot.slane %v783, 2
        %v785 = vadd.f32 %v783, %v784
        %v786 = vrot.slane %v785, 1
        %v787 = vadd.f32 %v785, %v786
        %v788 = vsel %vm295, %v750, 0.0
        %v789 = vrot.slane %v788, 4
        %v790 = vadd.f32 %v788, %v789
        %v791 = vrot.slane %v790, 2
        %v792 = vadd.f32 %v790, %v791
        %v793 = vrot.slane %v792, 1
        %v794 = vadd.f32 %v792, %v793
        %v795 = vsel %vm295, %v751, 0.0
        %v796 = vrot.slane %v795, 4
        %v797 = vadd.f32 %v795, %v796
        %v798 = vrot.slane %v797, 2
        %v799 = vadd.f32 %v797, %v798
        %v800 = vrot.slane %v799, 1
        %v801 = vadd.f32 %v799, %v800
        %v802 = vsel %vm295, %v752, 0.0
        %v803 = vrot.slane %v802, 4
        %v804 = vadd.f32 %v802, %v803
        %v805 = vrot.slane %v804, 2
        %v806 = vadd.f32 %v804, %v805
        %v807 = vrot.slane %v806, 1
        %v808 = vadd.f32 %v806, %v807
        %v817 = vsel %vm628, %v766, %v759
        %v818 = vsel %vm630, %v773, %v817
        %v819 = vsel %vm632, %v780, %v818
        %v820 = vsel %vm634, %v787, %v819
        %v821 = vsel %vm636, %v794, %v820
        %v822 = vsel %vm638, %v801, %v821
        %v823 = vsel %vm640, %v808, %v822
        %825 = vst.msk [vmem:[%s270] sm:$0xff] %vm295, %v823
        %s826 = sand.u32 %s146, 1
        %s827 = scalar_lea.sflag [#allocation4], %s826
        %s828 = sand.u32 %s146, 1
        %s829 = smul.addr %s828, 8
        %s830 = scalar_lea.vmem [#allocation7], %s829
        // Predicated region
        $region49: #{tpu_custom_call.1} parent=39 // pred_check
          %p831 = pneg %p156
        $region50: #{tpu_custom_call.1} parent=39 // pred_check_branch
          %833 = sbr.rel (%p831) target = $region52
        $region51: #{tpu_custom_call.1} parent=39 // pred_region
          %s835 = ssub.s32 128, 128
          %836 = vsyncadd %s827, %s835
          %s837 = smul.addr %s23, 128
          %s838 = scalar_lea.hbm %s5, %s837
          %s840 = sshll.u32 %s830, 4
          %s841 = int_to_ptr.vmem [resolvable:$true] %s840
          %843 = dma.vmem_to_hbm [thread:$0]  %s841, 128, %s838, %s827
        $region52: #{tpu_custom_call.1} parent=39 // pred_fallthru
          _
      $region40: #{tpu_custom_call.1} parent=5 // pred_fallthru
        _
      %p844 = scmp.le.s32.totalorder 2, %s18
      // Predicated region
      $region53: #{tpu_custom_call.1} parent=5 // pred_check
        %p845 = pneg %p844
      $region54: #{tpu_custom_call.1} parent=5 // pred_check_branch
        %847 = sbr.rel (%p845) target = $region56
      $region55: #{tpu_custom_call.1} parent=5 // pred_region
        %s848 = ssub.s32 %s18, 2
        // Predicated region
        $region57: #{tpu_custom_call.1} parent=55 // pred_check
          %p849 = pneg %p162
        $region58: #{tpu_custom_call.1} parent=55 // pred_check_branch
          %851 = sbr.rel (%p849) target = $region60
        $region59: #{tpu_custom_call.1} parent=55 // pred_region
          %s852 = sand.u32 %s147, 1
          %s853 = scalar_lea.sflag [#allocation4], %s852
          %s854 = sand.u32 %s147, 1
          %s855 = smul.addr %s854, 8
          %s856 = scalar_lea.vmem [#allocation7], %s855
          %857 = dma.done %s853, 128
        $region60: #{tpu_custom_call.1} parent=55 // pred_fallthru
          _
      $region56: #{tpu_custom_call.1} parent=5 // pred_fallthru
        _
    $region6: #{tpu_custom_call.1} parent=1 // loop_footer
      %s22 = sadd.s32 1, %s18
    $region7: #{tpu_custom_call.1} parent=1 // loop_footer_branch
      %17 = sbr.rel target = $region3
    $region8: #{tpu_custom_call.1} parent=1 // loop_exit
      _
    %858 = vsyncpa [#allocation3], 1
    %s859 = scalar_lea.sflag [#allocation3], 1
    %860 = vsyncpa %s859, 1
    %861 = vsyncpa [#allocation6], 1
    %862 = vsyncpa [#allocation4], 1
    %s863 = scalar_lea.sflag [#allocation4], 1
    %864 = vsyncpa %s863, 1

</llo_original>
